<compile_context>
chip_gen: v5e
topology: v5e:2x2
jax: 0.10.0
libtpu: 0.0.40
codegen_flags: <defaults>
</compile_context>

<pallas_src>
import jax
import jax.numpy as jnp
from jax.experimental import pallas as pl
from jax.experimental.pallas import tpu as pltpu


def gcp_kernel(x_ref, wa_ref, wm_ref, b_ref, o_ref):
    # x_ref : (bt, C, S)        lane-dense input block, S = H*W
    # wa_ref: (S, H*out_dim)    block-diagonal weight (channel-avg half)
    # wm_ref: (S, H*out_dim)    block-diagonal weight (channel-max half)
    # b_ref : (1, H*out_dim)    bias tiled H times along the lane dim
    # o_ref : (1, bt, H*out_dim)
    bt, c, s = x_ref.shape

    # Fused single-pass channel reduction in f32: one traversal of the block,
    # no block-sized f32 temporary.  C is small and static here, so the Python
    # loop unrolls into straight-line VPU code.
    x0 = x_ref[:, 0, :].astype(jnp.float32)             # (bt, S)
    acc_sum = x0
    acc_max = x0
    for k in range(1, c):
        xk = x_ref[:, k, :].astype(jnp.float32)
        acc_sum = acc_sum + xk
        acc_max = jnp.maximum(acc_max, xk)
    avg = acc_sum * (1.0 / c)                            # (bt, S)

    # One K = H*W GEMM per pooled operand against the block-diagonal weight.
    # Mathematically identical to per-row cat([avg_h, max_h]) @ W^T + b, but
    # the output row is H*out_dim lanes wide (unmasked store) and no
    # lane->sublane relayout of the pooled tensors is needed.
    y = (jnp.dot(avg, wa_ref[...], preferred_element_type=jnp.float32)
         + jnp.dot(acc_max, wm_ref[...], preferred_element_type=jnp.float32)
         + b_ref[...])                                   # (bt, H*out_dim)

    o_ref[...] = jax.nn.sigmoid(y).astype(o_ref.dtype)[None]


def _pick_block_batch(B, C, S, h_out, x_itemsize, out_itemsize, weight_bytes,
                      vmem_budget_bytes=10 << 20):
    """Largest divisor Bt of B whose per-step VMEM working set (double-buffered
    lane-dense input/output blocks, f32 accumulators, resident weights) fits a
    conservative budget that satisfies the smallest default scoped-VMEM limit
    (v5e: 16 MiB; v6e/v7x: 32 MiB).  Bt is additionally capped at B//8 so the
    grid keeps >= 8 steps when possible (>= 4 per v7x TensorCore) and the next
    block's DMA overlaps the current block's compute."""
    per_b = (2 * C * S * x_itemsize        # double-buffered input block
             + 2 * S * 4                   # f32 running sum + running max
             + h_out * 4                   # f32 projection/activation row
             + 2 * h_out * out_itemsize)   # double-buffered output block
    avail = vmem_budget_bytes - weight_bytes
    # TODO(synk): add a C / spatial grid axis with running-sum/max scratch if a
    # single batch element ever exceeds the VMEM budget; fail loudly for now.
    assert avail >= per_b, (
        f"one batch element needs ~{per_b} bytes of VMEM working set but only "
        f"{avail} bytes are budgeted; add C/spatial tiling for these shapes")
    max_bt = min(max(1, avail // per_b), max(1, B // 8))
    bt = 1
    for cand in range(1, B + 1):
        if B % cand == 0 and cand <= max_bt:
            bt = cand
    return bt


def global_channel_pooling(x, w_t, b, *, block_batch=None):
    """x: (B, C, H, W); w_t: (2W, out_dim) [transposed nn.Linear weight];
    b: (out_dim,).  Returns (B, 1, H, out_dim)."""
    B, C, H, W = x.shape
    two_w, out_dim = w_t.shape
    assert two_w == 2 * W, "Linear in_features must equal 2*W (in_dim == W)"

    S = H * W                      # lane-dense spatial extent
    h_out = H * out_dim            # lane-dense output row width

    # Block-diagonal weights: Wbd[h*W + w, h*out_dim + o] = w_half[w, o].
    # Size is quadratic in H, so guard it (fine while H*W, H*out_dim stay in
    # the few hundreds, as for this module).
    wbd_bytes = 2 * S * h_out * w_t.dtype.itemsize
    # TODO(synk): for very large H fall back to the split (W, out_dim) weights
    # with a (B*H, out_dim) output instead of the block-diagonal form.
    assert wbd_bytes <= (4 << 20), (
        f"block-diagonal weights would need {wbd_bytes} bytes; use the split-"
        f"weight fallback for these shapes")

    eye = jnp.eye(H, dtype=w_t.dtype)
    wbd_a = jnp.kron(eye, w_t[:W])                       # (S, H*out_dim)
    wbd_m = jnp.kron(eye, w_t[W:])                       # (S, H*out_dim)
    b_row = jnp.tile(b, (H,)).reshape(1, h_out)          # (1, H*out_dim)

    weight_resident = wbd_bytes + h_out * b.dtype.itemsize

    bt = block_batch or _pick_block_batch(
        B, C, S, h_out, x.dtype.itemsize, x.dtype.itemsize, weight_resident)
    assert B % bt == 0
    grid_b = B // bt

    # Metadata-only reshape: H, W are the contiguous minor dims of NCHW.
    x_flat = x.reshape(B, C, S)

    out = pl.pallas_call(
        gcp_kernel,
        out_shape=jax.ShapeDtypeStruct((grid_b, bt, h_out), x.dtype),
        grid_spec=pltpu.PrefetchScalarGridSpec(
            num_scalar_prefetch=0,
            grid=(grid_b,),
            in_specs=[
                pl.BlockSpec((bt, C, S), lambda i: (i, 0, 0)),
                pl.BlockSpec((S, h_out), lambda i: (0, 0)),   # resident weights
                pl.BlockSpec((S, h_out), lambda i: (0, 0)),
                pl.BlockSpec((1, h_out), lambda i: (0, 0)),
            ],
            out_specs=pl.BlockSpec((1, bt, h_out), lambda i: (i, 0, 0)),
        ),
        compiler_params=pltpu.CompilerParams(
            dimension_semantics=("parallel",)),
    )(x_flat, wbd_a, wbd_m, b_row)

    # Contiguous row-major reshape back to the module's output layout —
    # metadata-only, no data movement.
    return out.reshape(B, 1, H, out_dim)


def reference(x, w_t, b):
    avg = jnp.mean(x, axis=1, keepdims=True)       # (B,1,H,W)
    mx = jnp.max(x, axis=1, keepdims=True)         # (B,1,H,W)
    pooled = jnp.concatenate([avg, mx], axis=-1)   # (B,1,H,2W)
    return jax.nn.sigmoid(pooled @ w_t + b)        # (B,1,H,out_dim)


if __name__ == "__main__":
    # Small shapes consistent with the module: in_dim == W, out_dim == W.
    B, C, H, W = 2, 4, 16, 16
    in_dim, out_dim = W, W

    key = jax.random.PRNGKey(0)
    kx, kw, kb = jax.random.split(key, 3)

    x = jax.random.normal(kx, (B, C, H, W), dtype=jnp.float32)

    # Deterministic init matching nn.Linear defaults: U(-1/sqrt(fan_in), ...).
    fan_in = 2 * in_dim
    bound = 1.0 / (fan_in ** 0.5)
    # PyTorch weight is (out_dim, 2*in_dim); we store its transpose for x @ W^T.
    w_t = jax.random.uniform(kw, (2 * in_dim, out_dim),
                             minval=-bound, maxval=bound, dtype=jnp.float32)
    b = jax.random.uniform(kb, (out_dim,),
                           minval=-bound, maxval=bound, dtype=jnp.float32)

    out = global_channel_pooling(x, w_t, b)
    out = jax.block_until_ready(out)

    ref = reference(x, w_t, b)
    assert out.shape == (B, 1, H, out_dim)
    assert jnp.allclose(out, ref, atol=1e-5, rtol=1e-5)
    print("KERNEL_OK")
</pallas_src>

<mosaic_0001>
module attributes {stable_mosaic.version = 11 : i64} {
  func.func @gcp_kernel(%arg0: i32, %arg1: memref<1x4x256xf32, #tpu.memory_space<vmem>>, %arg2: memref<256x256xf32, #tpu.memory_space<vmem>>, %arg3: memref<256x256xf32, #tpu.memory_space<vmem>>, %arg4: memref<1x256xf32, #tpu.memory_space<vmem>>, %arg5: memref<1x1x256xf32, #tpu.memory_space<vmem>>) attributes {dimension_semantics = [#tpu.dimension_semantics<parallel>], iteration_bounds = array<i64: 2>, scalar_prefetch = 0 : i64, scratch_operands = 0 : i64, tpu.core_type = #tpu.core_type<tc>, window_params = [{transform_indices = @transform_0, window_bounds = array<i64: 1, 4, 256>}, {pipeline_mode = #tpu.pipeline_mode<synchronous>, transform_indices = @transform_1, window_bounds = array<i64: 256, 256>}, {pipeline_mode = #tpu.pipeline_mode<synchronous>, transform_indices = @transform_2, window_bounds = array<i64: 256, 256>}, {pipeline_mode = #tpu.pipeline_mode<synchronous>, transform_indices = @transform_3, window_bounds = array<i64: 1, 256>}, {transform_indices = @transform_4, window_bounds = array<i64: 1, 1, 256>}]} {
    %c0 = arith.constant 0 : index
    %c0_0 = arith.constant 0 : index
    %c0_1 = arith.constant 0 : index
    %0 = vector.load %arg1[%c0, %c0_0, %c0_1] : memref<1x4x256xf32, #tpu.memory_space<vmem>>, vector<1x1x256xf32>
    %1 = vector.shape_cast %0 : vector<1x1x256xf32> to vector<1x256xf32>
    %c0_2 = arith.constant 0 : index
    %c1 = arith.constant 1 : index
    %c0_3 = arith.constant 0 : index
    %2 = vector.load %arg1[%c0_2, %c1, %c0_3] : memref<1x4x256xf32, #tpu.memory_space<vmem>>, vector<1x1x256xf32>
    %3 = vector.shape_cast %2 : vector<1x1x256xf32> to vector<1x256xf32>
    %4 = arith.addf %1, %3 : vector<1x256xf32>
    %5 = arith.maximumf %1, %3 : vector<1x256xf32>
    %c0_4 = arith.constant 0 : index
    %c2 = arith.constant 2 : index
    %c0_5 = arith.constant 0 : index
    %6 = vector.load %arg1[%c0_4, %c2, %c0_5] : memref<1x4x256xf32, #tpu.memory_space<vmem>>, vector<1x1x256xf32>
    %7 = vector.shape_cast %6 : vector<1x1x256xf32> to vector<1x256xf32>
    %8 = arith.addf %4, %7 : vector<1x256xf32>
    %9 = arith.maximumf %5, %7 : vector<1x256xf32>
    %c0_6 = arith.constant 0 : index
    %c3 = arith.constant 3 : index
    %c0_7 = arith.constant 0 : index
    %10 = vector.load %arg1[%c0_6, %c3, %c0_7] : memref<1x4x256xf32, #tpu.memory_space<vmem>>, vector<1x1x256xf32>
    %11 = vector.shape_cast %10 : vector<1x1x256xf32> to vector<1x256xf32>
    %12 = arith.addf %8, %11 : vector<1x256xf32>
    %13 = arith.maximumf %9, %11 : vector<1x256xf32>
    %cst = arith.constant 2.500000e-01 : f32
    %14 = vector.broadcast %cst : f32 to vector<1x256xf32>
    %15 = arith.mulf %12, %14 : vector<1x256xf32>
    %c0_8 = arith.constant 0 : index
    %c0_9 = arith.constant 0 : index
    %16 = vector.load %arg2[%c0_8, %c0_9] : memref<256x256xf32, #tpu.memory_space<vmem>>, vector<256x256xf32>
    %cst_10 = arith.constant dense<0.000000e+00> : vector<1x256xf32>
    %17 = tpu.matmul %15, %16, %cst_10 {dimension_numbers = #tpu.dot_dimension_numbers<[1], [0], [0], [1], [0, 0, 1, 1], [], []>} : vector<1x256xf32>, vector<256x256xf32>, vector<1x256xf32> -> vector<1x256xf32>
    %c0_11 = arith.constant 0 : index
    %c0_12 = arith.constant 0 : index
    %18 = vector.load %arg3[%c0_11, %c0_12] : memref<256x256xf32, #tpu.memory_space<vmem>>, vector<256x256xf32>
    %cst_13 = arith.constant dense<0.000000e+00> : vector<1x256xf32>
    %19 = tpu.matmul %13, %18, %cst_13 {dimension_numbers = #tpu.dot_dimension_numbers<[1], [0], [0], [1], [0, 0, 1, 1], [], []>} : vector<1x256xf32>, vector<256x256xf32>, vector<1x256xf32> -> vector<1x256xf32>
    %20 = arith.addf %17, %19 : vector<1x256xf32>
    %c0_14 = arith.constant 0 : index
    %c0_15 = arith.constant 0 : index
    %21 = vector.load %arg4[%c0_14, %c0_15] : memref<1x256xf32, #tpu.memory_space<vmem>>, vector<1x256xf32>
    %22 = arith.addf %20, %21 : vector<1x256xf32>
    %23 = arith.negf %22 : vector<1x256xf32>
    %24 = math.exp %23 : vector<1x256xf32>
    %cst_16 = arith.constant 1.000000e+00 : f32
    %25 = vector.broadcast %cst_16 : f32 to vector<1x256xf32>
    %26 = arith.addf %25, %24 : vector<1x256xf32>
    %27 = arith.divf %25, %26 : vector<1x256xf32>
    %28 = vector.shape_cast %27 : vector<1x256xf32> to vector<1x1x256xf32>
    %c0_17 = arith.constant 0 : index
    %c0_18 = arith.constant 0 : index
    %c0_19 = arith.constant 0 : index
    %29 = vector.load %arg5[%c0_17, %c0_18, %c0_19] : memref<1x1x256xf32, #tpu.memory_space<vmem>>, vector<1x1x256xf32>
    tpu.vector_store %arg5[%c0_17, %c0_18, %c0_19], %28 {strides = array<i32>} : memref<1x1x256xf32, #tpu.memory_space<vmem>>, vector<1x1x256xf32>,
    return
  }
  func.func @transform_0(%arg0: i32) -> (i32, i32, i32) {
    %c0_i32 = arith.constant 0 : i32
    %c0_i32_0 = arith.constant 0 : i32
    %c0_i32_1 = arith.constant 0 : i32
    return %arg0, %c0_i32, %c0_i32_0 : i32, i32, i32
  }
  func.func @transform_1(%arg0: i32) -> (i32, i32) {
    %c0_i32 = arith.constant 0 : i32
    %c0_i32_0 = arith.constant 0 : i32
    %c0_i32_1 = arith.constant 0 : i32
    return %c0_i32, %c0_i32_0 : i32, i32
  }
  func.func @transform_2(%arg0: i32) -> (i32, i32) {
    %c0_i32 = arith.constant 0 : i32
    %c0_i32_0 = arith.constant 0 : i32
    %c0_i32_1 = arith.constant 0 : i32
    return %c0_i32, %c0_i32_0 : i32, i32
  }
  func.func @transform_3(%arg0: i32) -> (i32, i32) {
    %c0_i32 = arith.constant 0 : i32
    %c0_i32_0 = arith.constant 0 : i32
    %c0_i32_1 = arith.constant 0 : i32
    return %c0_i32, %c0_i32_0 : i32, i32
  }
  func.func @transform_4(%arg0: i32) -> (i32, i32, i32) {
    %c0_i32 = arith.constant 0 : i32
    %c0_i32_0 = arith.constant 0 : i32
    %c0_i32_1 = arith.constant 0 : i32
    return %arg0, %c0_i32, %c0_i32_0 : i32, i32, i32
  }
}

</mosaic_0001>

<llo_original>
// kernel: tpu_custom_call.1
$region0: #{tpu_custom_call.1}
  #allocation0 [shape = 'u32[]', space=smem, size = 0x4, offset = 0x4, fixed_abs, tag = 'smem constant byte address 0x4 - core index']
  #allocation1 [shape = 'u32[72,128]{1,0:T(1,128)}', space=vmem, size = 0x9000, scoped, tag = 'internal scratch']
  %s0 = inlined_call_operand.hbm [shape: f32[2,4,256], index: 0, kind: input, shape index: {}]
  %s1 = inlined_call_operand.hbm [shape: f32[256,256], index: 1, kind: input, shape index: {}]
  %s2 = inlined_call_operand.hbm [shape: f32[256,256], index: 2, kind: input, shape index: {}]
  %s3 = inlined_call_operand.vmem [shape: f32[1,256], index: 3, kind: input, shape index: {}]
  %s4 = inlined_call_operand.hbm [shape: f32[2,1,256], index: 4, kind: output, shape index: {}]
  %s5 = sld [smem:[#allocation0]]
  $region61: #{tpu_custom_call.1} parent=0
    _
  %s7 = ssub.s32 1, %s5
  %s8 = scalar_select 0, %s7, %s5
  $region1: #{tpu_custom_call.1} parent=0
    #allocation2 [shape = 'u8[8192]{0}', space=vmem, size = 0x2000, scoped, tag = 'input window, operand 0']
    #allocation3 [shape = 's32[2]{0}', space=sflag, size = 0x8, scoped, tag = 'scoped memory for tpu_custom_call.1']
    #allocation4 [shape = 's32[2]{0}', space=sflag, size = 0x8, scoped, tag = 'scoped memory for tpu_custom_call.1']
    #allocation5 [shape = 'u8[262144]{0}', space=vmem, size = 0x40000, scoped, tag = 'input window, operand 1, single buffered']
    #allocation6 [shape = 's32[1]{0}', space=sflag, size = 0x4, scoped, tag = 'scoped memory for tpu_custom_call.1']
    #allocation7 [shape = 'u8[262144]{0}', space=vmem, size = 0x40000, scoped, tag = 'input window, operand 2, single buffered']
    #allocation8 [shape = 'u8[2048]{0}', space=vmem, size = 0x800, scoped, tag = 'output window, operand 0']
    %9 = vsyncpa [#allocation3], 0
    %s10 = scalar_lea.sflag [#allocation3], 1
    %11 = vsyncpa %s10, 0
    %12 = vsyncpa [#allocation6], 0
    %13 = vsyncpa [#allocation4], 0
    %s14 = scalar_lea.sflag [#allocation4], 1
    %15 = vsyncpa %s14, 0
    loop: start=0, step=1, limit=4
    $region2: #{tpu_custom_call.1} parent=1 // loop_pre_header
      _
    $region3: #{tpu_custom_call.1} parent=1 // loop_header
      %s17 = sphi 0, %s21
      %p18 = scmp.ge.s32.totalorder %s17, 4
      %s27 = sphi 0, %s29
      %s30 = sphi 0, %s27
      %s31 = sphi 0, %s30
      %s47 = sphi 0, %s31
      %s51 = sphi 0, %s51
      %s53 = sphi 0, %s51
      %s54 = sphi 0, %s53
      %s68 = sphi 0, %s54
      %s72 = sphi 0, %s72
      %s74 = sphi 0, %s72
      %s75 = sphi 0, %s74
      %s89 = sphi 0, %s75
      %s93 = sphi 0, %s93
      %s95 = sphi 0, %s93
      %s96 = sphi 0, %s95
      %s110 = sphi 0, %s96
      %s116 = sphi 0, %s118
      %s119 = sphi 0, %s116
      %s120 = sphi 0, %s119
      %s136 = sphi 0, %s120
    $region4: #{tpu_custom_call.1} parent=1 // loop_header_branch
      %20 = sbr.rel (%p18) target = $region8
    $region5: #{tpu_custom_call.1} parent=1 // loop_body
      %s22 = ssub.s32 %s17, 1
      %s23 = ssub.s32 %s17, 2
      %s24 = sadd.s32 %s17, 1
      %s25 = ssub.s32 %s17, %s24
      %p26 = scmp.eq.s32.totalorder %s25, 0
      %s28 = sadd.s32 %s27, 1
      %s29 = scalar_select %p26, %s27, %s28
      %p32 = pneg %p26
      %p33 = scmp.eq.s32.totalorder %s17, 1
      %p34 = por %p32, %p33
      %p35 = scmp.ne.s32.totalorder %s27, %s30
      %p36 = scmp.eq.s32.totalorder %s17, 0
      %p37 = por %p35, %p36
      %p38 = scmp.ne.s32.totalorder %s27, %s30
      %p39 = scmp.eq.s32.totalorder %s22, 1
      %p40 = por %p38, %p39
      %p41 = scmp.ne.s32.totalorder %s30, %s31
      %p42 = scmp.eq.s32.totalorder %s22, 0
      %p43 = por %p41, %p42
      %p44 = scmp.ne.s32.totalorder %s30, %s31
      %p45 = scmp.eq.s32.totalorder %s23, 1
      %p46 = por %p44, %p45
      %p48 = scmp.ne.s32.totalorder %s31, %s47
      %p49 = scmp.eq.s32.totalorder %s23, 0
      %p50 = por %p48, %p49
      %s52 = sadd.s32 %s51, 1
      %p55 = scmp.eq.s32.totalorder %s17, 1
      %p56 = scmp.ne.s32.totalorder %s51, %s53
      %p57 = scmp.eq.s32.totalorder %s17, 0
      %p58 = por %p56, %p57
      %p59 = scmp.ne.s32.totalorder %s51, %s53
      %p60 = scmp.eq.s32.totalorder %s22, 1
      %p61 = por %p59, %p60
      %p62 = scmp.ne.s32.totalorder %s53, %s54
      %p63 = scmp.eq.s32.totalorder %s22, 0
      %p64 = por %p62, %p63
      %p65 = scmp.ne.s32.totalorder %s53, %s54
      %p66 = scmp.eq.s32.totalorder %s23, 1
      %p67 = por %p65, %p66
      %p69 = scmp.ne.s32.totalorder %s54, %s68
      %p70 = scmp.eq.s32.totalorder %s23, 0
      %p71 = por %p69, %p70
      %s73 = sadd.s32 %s72, 1
      %p76 = scmp.eq.s32.totalorder %s17, 1
      %p77 = scmp.ne.s32.totalorder %s72, %s74
      %p78 = scmp.eq.s32.totalorder %s17, 0
      %p79 = por %p77, %p78
      %p80 = scmp.ne.s32.totalorder %s72, %s74
      %p81 = scmp.eq.s32.totalorder %s22, 1
      %p82 = por %p80, %p81
      %p83 = scmp.ne.s32.totalorder %s74, %s75
      %p84 = scmp.eq.s32.totalorder %s22, 0
      %p85 = por %p83, %p84
      %p86 = scmp.ne.s32.totalorder %s74, %s75
      %p87 = scmp.eq.s32.totalorder %s23, 1
      %p88 = por %p86, %p87
      %p90 = scmp.ne.s32.totalorder %s75, %s89
      %p91 = scmp.eq.s32.totalorder %s23, 0
      %p92 = por %p90, %p91
      %s94 = sadd.s32 %s93, 1
      %p97 = scmp.eq.s32.totalorder %s17, 1
      %p98 = scmp.ne.s32.totalorder %s93, %s95
      %p99 = scmp.eq.s32.totalorder %s17, 0
      %p100 = por %p98, %p99
      %p101 = scmp.ne.s32.totalorder %s93, %s95
      %p102 = scmp.eq.s32.totalorder %s22, 1
      %p103 = por %p101, %p102
      %p104 = scmp.ne.s32.totalorder %s95, %s96
      %p105 = scmp.eq.s32.totalorder %s22, 0
      %p106 = por %p104, %p105
      %p107 = scmp.ne.s32.totalorder %s95, %s96
      %p108 = scmp.eq.s32.totalorder %s23, 1
      %p109 = por %p107, %p108
      %p111 = scmp.ne.s32.totalorder %s96, %s110
      %p112 = scmp.eq.s32.totalorder %s23, 0
      %p113 = por %p111, %p112
      %s114 = ssub.s32 %s17, %s24
      %p115 = scmp.eq.s32.totalorder %s114, 0
      %s117 = sadd.s32 %s116, 1
      %s118 = scalar_select %p115, %s116, %s117
      %p121 = pneg %p115
      %p122 = scmp.eq.s32.totalorder %s17, 1
      %p123 = por %p121, %p122
      %p124 = scmp.ne.s32.totalorder %s116, %s119
      %p125 = scmp.eq.s32.totalorder %s17, 0
      %p126 = por %p124, %p125
      %p127 = scmp.ne.s32.totalorder %s116, %s119
      %p128 = scmp.eq.s32.totalorder %s22, 1
      %p129 = por %p127, %p128
      %p130 = scmp.ne.s32.totalorder %s119, %s120
      %p131 = scmp.eq.s32.totalorder %s22, 0
      %p132 = por %p130, %p131
      %p133 = scmp.ne.s32.totalorder %s119, %s120
      %p134 = scmp.eq.s32.totalorder %s23, 1
      %p135 = por %p133, %p134
      %p137 = scmp.ne.s32.totalorder %s120, %s136
      %p138 = scmp.eq.s32.totalorder %s23, 0
      %p139 = por %p137, %p138
      %p140 = scmp.le.s32.totalorder 1, %s17
      %p141 = scmp.lt.s32.totalorder %s17, 3
      %p142 = pnand %p140, %p141
      %p143 = pneg %p142
      // Predicated region
      $region9: #{tpu_custom_call.1} parent=5 // pred_check
        _
      $region10: #{tpu_custom_call.1} parent=5 // pred_check_branch
        %145 = sbr.rel (%p142) target = $region12
      $region11: #{tpu_custom_call.1} parent=5 // pred_region
        %s146 = ssub.s32 %s17, 1
        // Predicated region
        $region13: #{tpu_custom_call.1} parent=11 // pred_check
          %p147 = pneg %p64
        $region14: #{tpu_custom_call.1} parent=11 // pred_check_branch
          %149 = sbr.rel (%p147) target = $region16
        $region15: #{tpu_custom_call.1} parent=11 // pred_region
          %151 = vsyncadd [#allocation6], 0
          %s152 = sshll.u32 %s1, 4
          %s153 = int_to_ptr.hbm [resolvable:$true] %s152
          %s154 = sshll.u32 [#allocation5], 4
          %s155 = int_to_ptr.vmem [resolvable:$true] %s154
          %160 = dma.hbm_to_vmem [thread:$0]  %s153, 8192, %s155, [#allocation6], 256, 256, 16
        $region16: #{tpu_custom_call.1} parent=11 // pred_fallthru
          _
        // Predicated region
        $region17: #{tpu_custom_call.1} parent=11 // pred_check
          %p161 = pneg %p85
        $region18: #{tpu_custom_call.1} parent=11 // pred_check_branch
          %163 = sbr.rel (%p161) target = $region20
        $region19: #{tpu_custom_call.1} parent=11 // pred_region
          %165 = vsyncadd [#allocation6], 0
          %s166 = sshll.u32 %s2, 4
          %s167 = int_to_ptr.hbm [resolvable:$true] %s166
          %s168 = sshll.u32 [#allocation7], 4
          %s169 = int_to_ptr.vmem [resolvable:$true] %s168
          %174 = dma.hbm_to_vmem [thread:$0]  %s167, 8192, %s169, [#allocation6], 256, 256, 16
        $region20: #{tpu_custom_call.1} parent=11 // pred_fallthru
          _
        // Predicated region
        $region21: #{tpu_custom_call.1} parent=11 // pred_check
          %p175 = pneg %p106
        $region22: #{tpu_custom_call.1} parent=11 // pred_check_branch
          %177 = sbr.rel (%p175) target = $region24
        $region23: #{tpu_custom_call.1} parent=11 // pred_region
          _
        $region24: #{tpu_custom_call.1} parent=11 // pred_fallthru
          _
      $region12: #{tpu_custom_call.1} parent=5 // pred_fallthru
        _
      %p178 = scmp.lt.s32.totalorder %s17, 2
      // Predicated region
      $region25: #{tpu_custom_call.1} parent=5 // pred_check
        %p179 = pneg %p178
      $region26: #{tpu_custom_call.1} parent=5 // pred_check_branch
        %181 = sbr.rel (%p179) target = $region28
      $region27: #{tpu_custom_call.1} parent=5 // pred_region
        // Predicated region
        $region29: #{tpu_custom_call.1} parent=27 // pred_check
          %p182 = pneg %p37
        $region30: #{tpu_custom_call.1} parent=27 // pred_check_branch
          %184 = sbr.rel (%p182) target = $region32
        $region31: #{tpu_custom_call.1} parent=27 // pred_region
          %s185 = sand.u32 %s27, 1
          %s186 = scalar_lea.sflag [#allocation3], %s185
          %s187 = sand.u32 %s27, 1
          %s188 = smul.addr %s187, 8
          %s189 = scalar_lea.vmem [#allocation2], %s188
          %191 = vsyncadd %s186, 0
          %s192 = smul.addr %s17, 2
          %s193 = smul.addr %s192, 4
          %s194 = scalar_lea.hbm %s0, %s193
          %s196 = sshll.u32 %s194, 4
          %s197 = int_to_ptr.hbm [resolvable:$true] %s196
          %s198 = sshll.u32 %s189, 4
          %s199 = int_to_ptr.vmem [resolvable:$true] %s198
          %201 = dma.hbm_to_vmem [thread:$0]  %s197, 128, %s199, %s186
        $region32: #{tpu_custom_call.1} parent=27 // pred_fallthru
          _
      $region28: #{tpu_custom_call.1} parent=5 // pred_fallthru
        _
      %p202 = scmp.le.s32.totalorder 1, %s17
      %p203 = scmp.lt.s32.totalorder %s17, 3
      %p204 = pnand %p202, %p203
      %p205 = pneg %p204
      // Predicated region
      $region33: #{tpu_custom_call.1} parent=5 // pred_check
        _
      $region34: #{tpu_custom_call.1} parent=5 // pred_check_branch
        %207 = sbr.rel (%p204) target = $region36
      $region35: #{tpu_custom_call.1} parent=5 // pred_region
        %s208 = ssub.s32 %s17, 1
        %s209 = sand.u32 %s30, 1
        %s210 = scalar_lea.sflag [#allocation3], %s209
        %s211 = sand.u32 %s30, 1
        %s212 = smul.addr %s211, 8
        %s213 = scalar_lea.vmem [#allocation2], %s212
        // Predicated region
        $region37: #{tpu_custom_call.1} parent=35 // pred_check
          %p214 = pneg %p43
        $region38: #{tpu_custom_call.1} parent=35 // pred_check_branch
          %216 = sbr.rel (%p214) target = $region40
        $region39: #{tpu_custom_call.1} parent=35 // pred_region
          %218 = dma.done %s210, 128
        $region40: #{tpu_custom_call.1} parent=35 // pred_fallthru
          _
        // Predicated region
        $region41: #{tpu_custom_call.1} parent=35 // pred_check
          %p219 = pneg %p64
        $region42: #{tpu_custom_call.1} parent=35 // pred_check_branch
          %221 = sbr.rel (%p219) target = $region44
        $region43: #{tpu_custom_call.1} parent=35 // pred_region
          %223 = dma.done [#allocation6], 8192
        $region44: #{tpu_custom_call.1} parent=35 // pred_fallthru
          _
        // Predicated region
        $region45: #{tpu_custom_call.1} parent=35 // pred_check
          %p224 = pneg %p85
        $region46: #{tpu_custom_call.1} parent=35 // pred_check_branch
          %226 = sbr.rel (%p224) target = $region48
        $region47: #{tpu_custom_call.1} parent=35 // pred_region
          %228 = dma.done [#allocation6], 8192
        $region48: #{tpu_custom_call.1} parent=35 // pred_fallthru
          _
        %s229 = sand.u32 %s30, 1
        %s230 = scalar_lea.sflag [#allocation3], %s229
        %s231 = sand.u32 %s30, 1
        %s232 = smul.addr %s231, 8
        %s233 = scalar_lea.vmem [#allocation2], %s232
        %p234 = pneg %p43
        %p235 = pneg %p40
        %p236 = pneg %p64
        %p237 = pneg %p61
        %p238 = pneg %p85
        %p239 = pneg %p82
        %p240 = pneg %p106
        %p241 = pneg %p103
        %p242 = pneg %p132
        %p243 = pneg %p129
        %s244 = sand.u32 %s119, 1
        %s245 = scalar_lea.sflag [#allocation4], %s244
        %s246 = sand.u32 %s119, 1
        %s247 = smul.addr %s246, 2
        %s248 = scalar_lea.vmem [#allocation8], %s247
        %v249 = vld [vmem:[%s213] ss:$4 sm:$0x3]
        %s250 = scalar_lea.vmem %s213, 1 [#allocation2]
        %v251 = vld [vmem:[%s250] ss:$4 sm:$0x3]
        %v252 = vadd.f32 %v249, %v251
        %v253 = vmax.f32 %v249, %v251
        %s254 = scalar_lea.vmem %s213, 2 [#allocation2]
        %v255 = vld [vmem:[%s254] ss:$4 sm:$0x3]
        %v256 = vadd.f32 %v252, %v255
        %v257 = vmax.f32 %v253, %v255
        %s258 = scalar_lea.vmem %s213, 3 [#allocation2]
        %v259 = vld [vmem:[%s258] ss:$4 sm:$0x3]
        %v260 = vadd.f32 %v256, %v259
        %v261 = vmax.f32 %v257, %v259
        %v262 = vmul.f32 %v260, 0.25
        %v263 = vld [vmem:[#allocation5] sm:$0xff]
        %v264 = vld [vmem:[#allocation5 + $0x8] sm:$0xff]
        %v265 = vld [vmem:[#allocation5 + $0x10] sm:$0xff]
        %v266 = vld [vmem:[#allocation5 + $0x18] sm:$0xff]
        %v267 = vld [vmem:[#allocation5 + $0x20] sm:$0xff]
        %v268 = vld [vmem:[#allocation5 + $0x28] sm:$0xff]
        %v269 = vld [vmem:[#allocation5 + $0x30] sm:$0xff]
        %v270 = vld [vmem:[#allocation5 + $0x38] sm:$0xff]
        %v271 = vld [vmem:[#allocation5 + $0x40] sm:$0xff]
        %v272 = vld [vmem:[#allocation5 + $0x48] sm:$0xff]
        %v273 = vld [vmem:[#allocation5 + $0x50] sm:$0xff]
        %v274 = vld [vmem:[#allocation5 + $0x58] sm:$0xff]
        %v275 = vld [vmem:[#allocation5 + $0x60] sm:$0xff]
        %v276 = vld [vmem:[#allocation5 + $0x68] sm:$0xff]
        %v277 = vld [vmem:[#allocation5 + $0x70] sm:$0xff]
        %v278 = vld [vmem:[#allocation5 + $0x78] sm:$0xff]
        %v279 = vld [vmem:[#allocation5 + $0x80] sm:$0xff]
        %v280 = vld [vmem:[#allocation5 + $0x88] sm:$0xff]
        %v281 = vld [vmem:[#allocation5 + $0x90] sm:$0xff]
        %v282 = vld [vmem:[#allocation5 + $0x98] sm:$0xff]
        %v283 = vld [vmem:[#allocation5 + $0xa0] sm:$0xff]
        %v284 = vld [vmem:[#allocation5 + $0xa8] sm:$0xff]
        %v285 = vld [vmem:[#allocation5 + $0xb0] sm:$0xff]
        %v286 = vld [vmem:[#allocation5 + $0xb8] sm:$0xff]
        %v287 = vld [vmem:[#allocation5 + $0xc0] sm:$0xff]
        %v288 = vld [vmem:[#allocation5 + $0xc8] sm:$0xff]
        %v289 = vld [vmem:[#allocation5 + $0xd0] sm:$0xff]
        %v290 = vld [vmem:[#allocation5 + $0xd8] sm:$0xff]
        %v291 = vld [vmem:[#allocation5 + $0xe0] sm:$0xff]
        %v292 = vld [vmem:[#allocation5 + $0xe8] sm:$0xff]
        %v293 = vld [vmem:[#allocation5 + $0xf0] sm:$0xff]
        %v294 = vld [vmem:[#allocation5 + $0xf8] sm:$0xff]
        %v295 = vld [vmem:[#allocation5 + $0x100] sm:$0xff]
        %v296 = vld [vmem:[#allocation5 + $0x108] sm:$0xff]
        %v297 = vld [vmem:[#allocation5 + $0x110] sm:$0xff]
        %v298 = vld [vmem:[#allocation5 + $0x118] sm:$0xff]
        %v299 = vld [vmem:[#allocation5 + $0x120] sm:$0xff]
        %v300 = vld [vmem:[#allocation5 + $0x128] sm:$0xff]
        %v301 = vld [vmem:[#allocation5 + $0x130] sm:$0xff]
        %v302 = vld [vmem:[#allocation5 + $0x138] sm:$0xff]
        %v303 = vld [vmem:[#allocation5 + $0x140] sm:$0xff]
        %v304 = vld [vmem:[#allocation5 + $0x148] sm:$0xff]
        %v305 = vld [vmem:[#allocation5 + $0x150] sm:$0xff]
        %v306 = vld [vmem:[#allocation5 + $0x158] sm:$0xff]
        %v307 = vld [vmem:[#allocation5 + $0x160] sm:$0xff]
        %v308 = vld [vmem:[#allocation5 + $0x168] sm:$0xff]
        %v309 = vld [vmem:[#allocation5 + $0x170] sm:$0xff]
        %v310 = vld [vmem:[#allocation5 + $0x178] sm:$0xff]
        %v311 = vld [vmem:[#allocation5 + $0x180] sm:$0xff]
        %v312 = vld [vmem:[#allocation5 + $0x188] sm:$0xff]
        %v313 = vld [vmem:[#allocation5 + $0x190] sm:$0xff]
        %v314 = vld [vmem:[#allocation5 + $0x198] sm:$0xff]
        %v315 = vld [vmem:[#allocation5 + $0x1a0] sm:$0xff]
        %v316 = vld [vmem:[#allocation5 + $0x1a8] sm:$0xff]
        %v317 = vld [vmem:[#allocation5 + $0x1b0] sm:$0xff]
        %v318 = vld [vmem:[#allocation5 + $0x1b8] sm:$0xff]
        %v319 = vld [vmem:[#allocation5 + $0x1c0] sm:$0xff]
        %v320 = vld [vmem:[#allocation5 + $0x1c8] sm:$0xff]
        %v321 = vld [vmem:[#allocation5 + $0x1d0] sm:$0xff]
        %v322 = vld [vmem:[#allocation5 + $0x1d8] sm:$0xff]
        %v323 = vld [vmem:[#allocation5 + $0x1e0] sm:$0xff]
        %v324 = vld [vmem:[#allocation5 + $0x1e8] sm:$0xff]
        %v325 = vld [vmem:[#allocation5 + $0x1f0] sm:$0xff]
        %v326 = vld [vmem:[#allocation5 + $0x1f8] sm:$0xff]
        %v327 = vld [vmem:[#allocation7] sm:$0xff]
        %v328 = vld [vmem:[#allocation7 + $0x8] sm:$0xff]
        %v329 = vld [vmem:[#allocation7 + $0x10] sm:$0xff]
        %v330 = vld [vmem:[#allocation7 + $0x18] sm:$0xff]
        %v331 = vld [vmem:[#allocation7 + $0x20] sm:$0xff]
        %v332 = vld [vmem:[#allocation7 + $0x28] sm:$0xff]
        %v333 = vld [vmem:[#allocation7 + $0x30] sm:$0xff]
        %v334 = vld [vmem:[#allocation7 + $0x38] sm:$0xff]
        %v335 = vld [vmem:[#allocation7 + $0x40] sm:$0xff]
        %v336 = vld [vmem:[#allocation7 + $0x48] sm:$0xff]
        %v337 = vld [vmem:[#allocation7 + $0x50] sm:$0xff]
        %v338 = vld [vmem:[#allocation7 + $0x58] sm:$0xff]
        %v339 = vld [vmem:[#allocation7 + $0x60] sm:$0xff]
        %v340 = vld [vmem:[#allocation7 + $0x68] sm:$0xff]
        %v341 = vld [vmem:[#allocation7 + $0x70] sm:$0xff]
        %v342 = vld [vmem:[#allocation7 + $0x78] sm:$0xff]
        %v343 = vld [vmem:[#allocation7 + $0x80] sm:$0xff]
        %v344 = vld [vmem:[#allocation7 + $0x88] sm:$0xff]
        %v345 = vld [vmem:[#allocation7 + $0x90] sm:$0xff]
        %v346 = vld [vmem:[#allocation7 + $0x98] sm:$0xff]
        %v347 = vld [vmem:[#allocation7 + $0xa0] sm:$0xff]
        %v348 = vld [vmem:[#allocation7 + $0xa8] sm:$0xff]
        %v349 = vld [vmem:[#allocation7 + $0xb0] sm:$0xff]
        %v350 = vld [vmem:[#allocation7 + $0xb8] sm:$0xff]
        %v351 = vld [vmem:[#allocation7 + $0xc0] sm:$0xff]
        %v352 = vld [vmem:[#allocation7 + $0xc8] sm:$0xff]
        %v353 = vld [vmem:[#allocation7 + $0xd0] sm:$0xff]
        %v354 = vld [vmem:[#allocation7 + $0xd8] sm:$0xff]
        %v355 = vld [vmem:[#allocation7 + $0xe0] sm:$0xff]
        %v356 = vld [vmem:[#allocation7 + $0xe8] sm:$0xff]
        %v357 = vld [vmem:[#allocation7 + $0xf0] sm:$0xff]
        %v358 = vld [vmem:[#allocation7 + $0xf8] sm:$0xff]
        %v359 = vld [vmem:[#allocation7 + $0x100] sm:$0xff]
        %v360 = vld [vmem:[#allocation7 + $0x108] sm:$0xff]
        %v361 = vld [vmem:[#allocation7 + $0x110] sm:$0xff]
        %v362 = vld [vmem:[#allocation7 + $0x118] sm:$0xff]
        %v363 = vld [vmem:[#allocation7 + $0x120] sm:$0xff]
        %v364 = vld [vmem:[#allocation7 + $0x128] sm:$0xff]
        %v365 = vld [vmem:[#allocation7 + $0x130] sm:$0xff]
        %v366 = vld [vmem:[#allocation7 + $0x138] sm:$0xff]
        %v367 = vld [vmem:[#allocation7 + $0x140] sm:$0xff]
        %v368 = vld [vmem:[#allocation7 + $0x148] sm:$0xff]
        %v369 = vld [vmem:[#allocation7 + $0x150] sm:$0xff]
        %v370 = vld [vmem:[#allocation7 + $0x158] sm:$0xff]
        %v371 = vld [vmem:[#allocation7 + $0x160] sm:$0xff]
        %v372 = vld [vmem:[#allocation7 + $0x168] sm:$0xff]
        %v373 = vld [vmem:[#allocation7 + $0x170] sm:$0xff]
        %v374 = vld [vmem:[#allocation7 + $0x178] sm:$0xff]
        %v375 = vld [vmem:[#allocation7 + $0x180] sm:$0xff]
        %v376 = vld [vmem:[#allocation7 + $0x188] sm:$0xff]
        %v377 = vld [vmem:[#allocation7 + $0x190] sm:$0xff]
        %v378 = vld [vmem:[#allocation7 + $0x198] sm:$0xff]
        %v379 = vld [vmem:[#allocation7 + $0x1a0] sm:$0xff]
        %v380 = vld [vmem:[#allocation7 + $0x1a8] sm:$0xff]
        %v381 = vld [vmem:[#allocation7 + $0x1b0] sm:$0xff]
        %v382 = vld [vmem:[#allocation7 + $0x1b8] sm:$0xff]
        %v383 = vld [vmem:[#allocation7 + $0x1c0] sm:$0xff]
        %v384 = vld [vmem:[#allocation7 + $0x1c8] sm:$0xff]
        %v385 = vld [vmem:[#allocation7 + $0x1d0] sm:$0xff]
        %v386 = vld [vmem:[#allocation7 + $0x1d8] sm:$0xff]
        %v387 = vld [vmem:[#allocation7 + $0x1e0] sm:$0xff]
        %v388 = vld [vmem:[#allocation7 + $0x1e8] sm:$0xff]
        %v389 = vld [vmem:[#allocation7 + $0x1f0] sm:$0xff]
        %v390 = vld [vmem:[#allocation7 + $0x1f8] sm:$0xff]
        %v392 = vperm.slane %v261, 0
        %v393 = vperm.slane %v261, 1
        %396 = vmatpush.msra.mxu0 %v357
        %397 = vmatpush.msra.mxu0 %v355
        %398 = vmatpush.msra.mxu0 %v353
        %399 = vmatpush.msra.mxu0 %v351
        %400 = vmatpush.msra.mxu0 %v349
        %401 = vmatpush.msra.mxu0 %v347
        %402 = vmatpush.msra.mxu0 %v345
        %403 = vmatpush.msra.mxu0 %v343
        %404 = vmatpush.msra.mxu0 %v341
        %405 = vmatpush.msra.mxu0 %v339
        %406 = vmatpush.msra.mxu0 %v337
        %407 = vmatpush.msra.mxu0 %v335
        %408 = vmatpush.msra.mxu0 %v333
        %409 = vmatpush.msra.mxu0 %v331
        %410 = vmatpush.msra.mxu0 %v329
        %411 = vmatpush.msra.mxu0 %v327
        %412 = vmatmul.f32.gmra.mxu0 %v392
        %v413 = vpop.f32.mrf.mxu0
        %v414 = vadd.f32 0.0, %v413
        %415 = vdwg.mxu0
        %416 = vmatpush.msra.mxu0 %v389
        %417 = vmatpush.msra.mxu0 %v387
        %418 = vmatpush.msra.mxu0 %v385
        %419 = vmatpush.msra.mxu0 %v383
        %420 = vmatpush.msra.mxu0 %v381
        %421 = vmatpush.msra.mxu0 %v379
        %422 = vmatpush.msra.mxu0 %v377
        %423 = vmatpush.msra.mxu0 %v375
        %424 = vmatpush.msra.mxu0 %v373
        %425 = vmatpush.msra.mxu0 %v371
        %426 = vmatpush.msra.mxu0 %v369
        %427 = vmatpush.msra.mxu0 %v367
        %428 = vmatpush.msra.mxu0 %v365
        %429 = vmatpush.msra.mxu0 %v363
        %430 = vmatpush.msra.mxu0 %v361
        %431 = vmatpush.msra.mxu0 %v359
        %432 = vmatmul.f32.gmra.mxu0 %v393
        %v433 = vpop.f32.mrf.mxu0
        %v434 = vadd.f32 %v414, %v433
        %435 = vdwg.mxu0
        %436 = vmatpush.msra.mxu0 %v358
        %437 = vmatpush.msra.mxu0 %v356
        %438 = vmatpush.msra.mxu0 %v354
        %439 = vmatpush.msra.mxu0 %v352
        %440 = vmatpush.msra.mxu0 %v350
        %441 = vmatpush.msra.mxu0 %v348
        %442 = vmatpush.msra.mxu0 %v346
        %443 = vmatpush.msra.mxu0 %v344
        %444 = vmatpush.msra.mxu0 %v342
        %445 = vmatpush.msra.mxu0 %v340
        %446 = vmatpush.msra.mxu0 %v338
        %447 = vmatpush.msra.mxu0 %v336
        %448 = vmatpush.msra.mxu0 %v334
        %449 = vmatpush.msra.mxu0 %v332
        %450 = vmatpush.msra.mxu0 %v330
        %451 = vmatpush.msra.mxu0 %v328
        %452 = vmatmul.f32.gmra.mxu0 %v392
        %v453 = vpop.f32.mrf.mxu0
        %v454 = vadd.f32 0.0, %v453
        %455 = vdwg.mxu0
        %456 = vmatpush.msra.mxu0 %v390
        %457 = vmatpush.msra.mxu0 %v388
        %458 = vmatpush.msra.mxu0 %v386
        %459 = vmatpush.msra.mxu0 %v384
        %460 = vmatpush.msra.mxu0 %v382
        %461 = vmatpush.msra.mxu0 %v380
        %462 = vmatpush.msra.mxu0 %v378
        %463 = vmatpush.msra.mxu0 %v376
        %464 = vmatpush.msra.mxu0 %v374
        %465 = vmatpush.msra.mxu0 %v372
        %466 = vmatpush.msra.mxu0 %v370
        %467 = vmatpush.msra.mxu0 %v368
        %468 = vmatpush.msra.mxu0 %v366
        %469 = vmatpush.msra.mxu0 %v364
        %470 = vmatpush.msra.mxu0 %v362
        %471 = vmatpush.msra.mxu0 %v360
        %472 = vmatmul.f32.gmra.mxu0 %v393
        %v473 = vpop.f32.mrf.mxu0
        %v474 = vadd.f32 %v454, %v473
        %475 = vdwg.mxu0
        %v477 = vperm.slane %v262, 0
        %v478 = vperm.slane %v262, 1
        %481 = vmatpush.msra.mxu0 %v293
        %482 = vmatpush.msra.mxu0 %v291
        %483 = vmatpush.msra.mxu0 %v289
        %484 = vmatpush.msra.mxu0 %v287
        %485 = vmatpush.msra.mxu0 %v285
        %486 = vmatpush.msra.mxu0 %v283
        %487 = vmatpush.msra.mxu0 %v281
        %488 = vmatpush.msra.mxu0 %v279
        %489 = vmatpush.msra.mxu0 %v277
        %490 = vmatpush.msra.mxu0 %v275
        %491 = vmatpush.msra.mxu0 %v273
        %492 = vmatpush.msra.mxu0 %v271
        %493 = vmatpush.msra.mxu0 %v269
        %494 = vmatpush.msra.mxu0 %v267
        %495 = vmatpush.msra.mxu0 %v265
        %496 = vmatpush.msra.mxu0 %v263
        %497 = vmatmul.f32.gmra.mxu0 %v477
        %v498 = vpop.f32.mrf.mxu0
        %v499 = vadd.f32 %v434, %v498
        %500 = vdwg.mxu0
        %501 = vmatpush.msra.mxu0 %v325
        %502 = vmatpush.msra.mxu0 %v323
        %503 = vmatpush.msra.mxu0 %v321
        %504 = vmatpush.msra.mxu0 %v319
        %505 = vmatpush.msra.mxu0 %v317
        %506 = vmatpush.msra.mxu0 %v315
        %507 = vmatpush.msra.mxu0 %v313
        %508 = vmatpush.msra.mxu0 %v311
        %509 = vmatpush.msra.mxu0 %v309
        %510 = vmatpush.msra.mxu0 %v307
        %511 = vmatpush.msra.mxu0 %v305
        %512 = vmatpush.msra.mxu0 %v303
        %513 = vmatpush.msra.mxu0 %v301
        %514 = vmatpush.msra.mxu0 %v299
        %515 = vmatpush.msra.mxu0 %v297
        %516 = vmatpush.msra.mxu0 %v295
        %517 = vmatmul.f32.gmra.mxu0 %v478
        %v518 = vpop.f32.mrf.mxu0
        %v519 = vadd.f32 %v499, %v518
        %520 = vdwg.mxu0
        %521 = vmatpush.msra.mxu0 %v294
        %522 = vmatpush.msra.mxu0 %v292
        %523 = vmatpush.msra.mxu0 %v290
        %524 = vmatpush.msra.mxu0 %v288
        %525 = vmatpush.msra.mxu0 %v286
        %526 = vmatpush.msra.mxu0 %v284
        %527 = vmatpush.msra.mxu0 %v282
        %528 = vmatpush.msra.mxu0 %v280
        %529 = vmatpush.msra.mxu0 %v278
        %530 = vmatpush.msra.mxu0 %v276
        %531 = vmatpush.msra.mxu0 %v274
        %532 = vmatpush.msra.mxu0 %v272
        %533 = vmatpush.msra.mxu0 %v270
        %534 = vmatpush.msra.mxu0 %v268
        %535 = vmatpush.msra.mxu0 %v266
        %536 = vmatpush.msra.mxu0 %v264
        %537 = vmatmul.f32.gmra.mxu0 %v477
        %v538 = vpop.f32.mrf.mxu0
        %v539 = vadd.f32 %v474, %v538
        %540 = vdwg.mxu0
        %541 = vmatpush.msra.mxu0 %v326
        %542 = vmatpush.msra.mxu0 %v324
        %543 = vmatpush.msra.mxu0 %v322
        %544 = vmatpush.msra.mxu0 %v320
        %545 = vmatpush.msra.mxu0 %v318
        %546 = vmatpush.msra.mxu0 %v316
        %547 = vmatpush.msra.mxu0 %v314
        %548 = vmatpush.msra.mxu0 %v312
        %549 = vmatpush.msra.mxu0 %v310
        %550 = vmatpush.msra.mxu0 %v308
        %551 = vmatpush.msra.mxu0 %v306
        %552 = vmatpush.msra.mxu0 %v304
        %553 = vmatpush.msra.mxu0 %v302
        %554 = vmatpush.msra.mxu0 %v300
        %555 = vmatpush.msra.mxu0 %v298
        %556 = vmatpush.msra.mxu0 %v296
        %557 = vmatmul.f32.gmra.mxu0 %v478
        %v558 = vpop.f32.mrf.mxu0
        %v559 = vadd.f32 %v539, %v558
        %560 = vdwg.mxu0
        %v561 = vld [vmem:[%s3] sm:$0x3]
        %v563 = vperm.slane %v561, 0
        %v564 = vperm.slane %v561, 1
        %v567 = vadd.f32 %v519, %v563
        %v568 = vadd.f32 %v559, %v564
        %v569 = vxor.u32 %v567, 2147483648
        %v570 = vxor.u32 %v568, 2147483648
        %v571 = vmul.f32 %v569, 1.442695
        %v572 = vpow.pop %v571
        %v573 = vmul.f32 %v570, 1.442695
        %v574 = vpow.pop %v573
        %v575 = vadd.f32 %v572, 1.0
        %v576 = vadd.f32 %v574, 1.0
        %v577 = vrcp.pop %v575
        %v578 = vmul.f32 %v575, %v577
        %v579 = vsub.f32 1.0, %v578
        %v580 = vmul.f32 %v577, %v579
        %v581 = vadd.f32 %v577, %v580
        %vm582 = vweird.f32 %v575
        %vm583 = vweird.f32 %v577
        %vm584 = vmor %vm582, %vm583
        %v585 = vsel %vm584, %v577, %v581
        %v586 = vand.u32 2147483647, %v575
        %vm587 = vcmp.eq.f32.partialorder %v586, 8.507059e+37
        %v588 = vand.u32 %v575, 2147483648
        %v589 = vor.u32 1.1754944e-38, %v588
        %v590 = vsel %vm587, %v589, %v585
        %v591 = vmul.f32 1.0, %v590
        %v592 = vrcp.pop %v576
        %v593 = vmul.f32 %v576, %v592
        %v594 = vsub.f32 1.0, %v593
        %v595 = vmul.f32 %v592, %v594
        %v596 = vadd.f32 %v592, %v595
        %vm597 = vweird.f32 %v576
        %vm598 = vweird.f32 %v592
        %vm599 = vmor %vm597, %vm598
        %v600 = vsel %vm599, %v592, %v596
        %v601 = vand.u32 2147483647, %v576
        %vm602 = vcmp.eq.f32.partialorder %v601, 8.507059e+37
        %v603 = vand.u32 %v576, 2147483648
        %v604 = vor.u32 1.1754944e-38, %v603
        %v605 = vsel %vm602, %v604, %v600
        %v606 = vmul.f32 1.0, %v605
        %v609 = vrot.slane %v606, 7
        %vm610 = vcmask 1040384
        %v611 = vsel %vm610, %v591, %v609
        %v613 = vlaneseq
        %vm614 = vcmp.ge.s32.totalorder %v613, 0
        %vm615 = vcmp.lt.s32.totalorder %v613, 256
        %vm616 = vmand %vm614, %vm615
        %617 = vst.msk [vmem:[%s248] sm:$0x3] %vm616, %v611
        %s618 = sand.u32 %s119, 1
        %s619 = scalar_lea.sflag [#allocation4], %s618
        %s620 = sand.u32 %s119, 1
        %s621 = smul.addr %s620, 2
        %s622 = scalar_lea.vmem [#allocation8], %s621
        // Predicated region
        $region49: #{tpu_custom_call.1} parent=35 // pred_check
          %p623 = pneg %p129
        $region50: #{tpu_custom_call.1} parent=35 // pred_check_branch
          %625 = sbr.rel (%p623) target = $region52
        $region51: #{tpu_custom_call.1} parent=35 // pred_region
          %627 = vsyncadd %s619, 0
          %s628 = smul.addr %s22, 2
          %s629 = scalar_lea.hbm %s4, %s628
          %s631 = sshll.u32 %s622, 4
          %s632 = int_to_ptr.vmem [resolvable:$true] %s631
          %s633 = sshll.u32 %s629, 4
          %s634 = int_to_ptr.hbm [resolvable:$true] %s633
          %636 = dma.vmem_to_hbm [thread:$0]  %s632, 32, %s634, %s619
        $region52: #{tpu_custom_call.1} parent=35 // pred_fallthru
          _
      $region36: #{tpu_custom_call.1} parent=5 // pred_fallthru
        _
      %p637 = scmp.le.s32.totalorder 2, %s17
      // Predicated region
      $region53: #{tpu_custom_call.1} parent=5 // pred_check
        %p638 = pneg %p637
      $region54: #{tpu_custom_call.1} parent=5 // pred_check_branch
        %640 = sbr.rel (%p638) target = $region56
      $region55: #{tpu_custom_call.1} parent=5 // pred_region
        %s641 = ssub.s32 %s17, 2
        // Predicated region
        $region57: #{tpu_custom_call.1} parent=55 // pred_check
          %p642 = pneg %p135
        $region58: #{tpu_custom_call.1} parent=55 // pred_check_branch
          %644 = sbr.rel (%p642) target = $region60
        $region59: #{tpu_custom_call.1} parent=55 // pred_region
          %s645 = sand.u32 %s120, 1
          %s646 = scalar_lea.sflag [#allocation4], %s645
          %s647 = sand.u32 %s120, 1
          %s648 = smul.addr %s647, 2
          %s649 = scalar_lea.vmem [#allocation8], %s648
          %651 = dma.done %s646, 32
        $region60: #{tpu_custom_call.1} parent=55 // pred_fallthru
          _
      $region56: #{tpu_custom_call.1} parent=5 // pred_fallthru
        _
    $region6: #{tpu_custom_call.1} parent=1 // loop_footer
      %s21 = sadd.s32 1, %s17
    $region7: #{tpu_custom_call.1} parent=1 // loop_footer_branch
      %16 = sbr.rel target = $region3
    $region8: #{tpu_custom_call.1} parent=1 // loop_exit
      _
    %652 = vsyncpa [#allocation3], 1
    %s653 = scalar_lea.sflag [#allocation3], 1
    %654 = vsyncpa %s653, 1
    %655 = vsyncpa [#allocation6], 1
    %656 = vsyncpa [#allocation4], 1
    %s657 = scalar_lea.sflag [#allocation4], 1
    %658 = vsyncpa %s657, 1

</llo_original>
